<compile_context>
chip_gen: v5e
topology: v5e:2x2
jax: 0.10.0
libtpu: 0.0.40
codegen_flags: <defaults>
</compile_context>

<pallas_src>
import functools

import jax
import jax.numpy as jnp
from jax.experimental import pallas as pl
from jax.experimental.pallas import tpu as pltpu


def _round_up(n, m):
    return ((n + m - 1) // m) * m


# ----------------------------------------------------------------------------
# Glue: patch extraction (matches torch.unfold/unfold/permute/view exactly)
# ----------------------------------------------------------------------------
def generate_patches(x, patch_size, patch_stride):
    """x: (B, C, H, W) NCHW -> (B, nH, nW, C, P, P), same as the torch version."""
    B, C, H, W = x.shape
    P, S = patch_size, patch_stride
    nH = (H - P) // S + 1
    nW = (W - P) // S + 1
    row_idx = jnp.arange(nH)[:, None] * S + jnp.arange(P)[None, :]   # (nH, P)
    col_idx = jnp.arange(nW)[:, None] * S + jnp.arange(P)[None, :]   # (nW, P)
    patches = x[:, :, row_idx, :]                  # (B, C, nH, P, W)
    patches = patches[:, :, :, :, col_idx]         # (B, C, nH, P, nW, P)
    patches = jnp.transpose(patches, (0, 2, 4, 1, 3, 5))   # (B, nH, nW, C, P, P)
    return patches


# ----------------------------------------------------------------------------
# Pallas kernel: fused MLP  out = relu(x @ W1 + b1) @ W2 + b2   (per N-tile)
# ----------------------------------------------------------------------------
def _embed_mlp_kernel(x_ref, w1_ref, b1_ref, w2_ref, b2_ref, o_ref):
    x = x_ref[...]                                                    # (TM, D) bf16
    h = jnp.dot(x, w1_ref[...], preferred_element_type=jnp.float32)  # (TM, H) f32
    h = jnp.maximum(h + b1_ref[...], 0.0)          # f32 epilogue (v5e: no bf16 VPU)
    h = h.astype(w2_ref.dtype)                     # bf16 MXU path
    out = jnp.dot(h, w2_ref[...], preferred_element_type=jnp.float32)
    o_ref[...] = (out + b2_ref[...]).astype(o_ref.dtype)   # bf16, lane-dense store


# ----------------------------------------------------------------------------
# Wrapper: tiling / VMEM budgeting / pallas_call
# ----------------------------------------------------------------------------
_VMEM_BUDGET = 12 * 1024 * 1024   # stay under every generation's default scoped VMEM
_TM_MAX = 2048                    # review: v5e/v6e can take 2048+, v7x ~1024-2048


def _vmem_needed(tm, D, H, E_pad):
    """Per-step VMEM footprint, including lane padding and default double-buffering."""
    D_l = _round_up(D, 128)                       # x tile lanes pad (e.g. 192 -> 256)
    H_l = _round_up(H, 128)
    buf_x = 2 * tm * D_l * 2                      # bf16 x tile, double-buffered
    buf_o = 2 * tm * E_pad * 2                    # bf16 out tile, double-buffered
    # constant-index_map weight/bias blocks are still double-buffered by default
    buf_w = 2 * (D_l * H_l * 2 + H_l * E_pad * 2 + 8 * H_l * 4 + 8 * E_pad * 4)
    # f32 intermediates (h, out) + bf16 copy of h
    interm = tm * H_l * 4 + tm * E_pad * 4 + tm * H_l * 2
    return buf_x + buf_o + buf_w + interm


def embedding_net_pallas(patches_flat, w1, b1, w2, b2):
    """patches_flat: (N, D).  Returns the padded (N_pad, E_pad) bf16 buffer.

    Rows >= N contain nonzero garbage (relu(b1)@W2 + b2) and columns >= E are
    zero-padding; callers must index [:N, :E].  Returning the padded slab lets
    consumers fuse that slice instead of paying an extra HBM round trip.
    """
    N, D = patches_flat.shape
    H = w1.shape[1]
    E = w2.shape[1]
    E_pad = _round_up(E, 128)          # lane-dense output stores / writeback DMA

    # ---- dtypes: bf16 streams, f32 accumulation, f32 biases ----------------
    x_b = patches_flat.astype(jnp.bfloat16)
    w1_b = w1.astype(jnp.bfloat16)
    w2_b = jnp.zeros((H, E_pad), jnp.bfloat16).at[:, :E].set(w2.astype(jnp.bfloat16))
    b1_f = b1.reshape(1, H).astype(jnp.float32)
    b2_f = jnp.zeros((1, E_pad), jnp.float32).at[:, :E].set(
        b2.reshape(1, E).astype(jnp.float32))

    # ---- tile size ----------------------------------------------------------
    # * multiple of 16 (bf16 sublane packing; satisfies the (8,128) rule)
    # * grid length >= 2 whenever N > 16 so both v7x TensorCores get work
    # * grows toward _TM_MAX while the per-step VMEM footprint fits the budget
    TM = min(_TM_MAX, _round_up(pl.cdiv(N, 2), 16))
    while TM > 16 and _vmem_needed(TM, D, H, E_pad) > _VMEM_BUDGET:
        TM = _round_up(TM // 2, 16)
    N_pad = _round_up(N, TM)
    if N_pad != N:
        x_b = jnp.pad(x_b, ((0, N_pad - N), (0, 0)))
    grid = (N_pad // TM,)

    # ---- only raise the scoped VMEM limit when the budget truly overflows ---
    needed = _vmem_needed(TM, D, H, E_pad)
    vmem_limit = None
    if needed > _VMEM_BUDGET:
        # cap well below v7x's 64 MiB physical VMEM; leave Mosaic scratch headroom
        vmem_limit = min(48 * 1024 * 1024, 2 * needed)

    cost = pl.CostEstimate(
        flops=2 * N_pad * (D * H + H * E_pad),
        transcendentals=0,
        bytes_accessed=(N_pad * D * 2 + N_pad * E_pad * 2
                        + (D * H + H * E_pad) * 2 + (H + E_pad) * 4),
    )

    out_pad = pl.pallas_call(
        _embed_mlp_kernel,
        out_shape=jax.ShapeDtypeStruct((N_pad, E_pad), jnp.bfloat16),
        grid=grid,
        in_specs=[
            pl.BlockSpec((TM, D), lambda i: (i, 0)),     # x: tiled over patches
            pl.BlockSpec((D, H), lambda i: (0, 0)),      # W1: VMEM-resident
            pl.BlockSpec((1, H), lambda i: (0, 0)),      # b1
            pl.BlockSpec((H, E_pad), lambda i: (0, 0)),  # W2 (lane-padded)
            pl.BlockSpec((1, E_pad), lambda i: (0, 0)),  # b2 (lane-padded)
        ],
        out_specs=pl.BlockSpec((TM, E_pad), lambda i: (i, 0)),
        compiler_params=pltpu.CompilerParams(
            dimension_semantics=("parallel",),           # megacore sharding on v7x
            vmem_limit_bytes=vmem_limit,
        ),
        cost_estimate=cost,
    )(x_b, w1_b, b1_f, w2_b, b2_f)

    return out_pad


# ----------------------------------------------------------------------------
# ConvEmbeddingNet forward
# ----------------------------------------------------------------------------
@functools.partial(jax.jit, static_argnums=(2, 3))
def conv_embedding_net_forward(x, params, patch_size, patch_stride):
    """x: (B, C, H, W).  Returns (B*nH*nW, E) float32 — one embedding per patch."""
    patches = generate_patches(x, patch_size, patch_stride)      # (B,nH,nW,C,P,P)
    B, nH, nW, C, P, _ = patches.shape
    N = B * nH * nW
    # torch .view(N, C, P, P) followed by the MLP's Flatten -> (N, C*P*P).
    # TODO(synk): move this gather into the kernel (Option B: memory_space=pl.ANY
    # + manual make_async_copy row gather) to avoid materializing the
    # (P/S)^2-amplified patch slab in HBM.
    patches_flat = patches.reshape(N, C * P * P)
    w1, b1, w2, b2 = params
    E = w2.shape[1]
    out_pad = embedding_net_pallas(patches_flat, w1, b1, w2, b2)
    # Module semantics: (N, E) float32.  Consumers that can work directly on the
    # padded bf16 slab should call embedding_net_pallas instead and fuse this.
    return out_pad[:N, :E].astype(jnp.float32)


# ----------------------------------------------------------------------------
# Deterministic parameter init + demo
# ----------------------------------------------------------------------------
def init_params(key, in_dim, hidden_dim, emb_dim):
    k1, k2 = jax.random.split(key)
    w1 = jax.random.normal(k1, (in_dim, hidden_dim), jnp.float32) * (1.0 / in_dim ** 0.5)
    b1 = jnp.zeros((1, hidden_dim), jnp.float32)
    w2 = jax.random.normal(k2, (hidden_dim, emb_dim), jnp.float32) * (1.0 / hidden_dim ** 0.5)
    b2 = jnp.zeros((1, emb_dim), jnp.float32)
    return (w1, b1, w2, b2)


if __name__ == "__main__":
    # Small shapes consistent with the module:
    #   images (B, C, H, W) = (2, 3, 16, 16), patch_size=8, patch_stride=4
    #   -> patch_num_dim = (16 - 8)/4 + 1 = 3, so 2*3*3 = 18 patches of (3, 8, 8)
    B, C, IMG = 2, 3, 16
    PATCH, STRIDE = 8, 4
    HIDDEN, EMB = 128, 32

    key = jax.random.PRNGKey(0)
    kx, kp = jax.random.split(key)
    x = jax.random.normal(kx, (B, C, IMG, IMG), jnp.float32)
    params = init_params(kp, C * PATCH * PATCH, HIDDEN, EMB)

    out = conv_embedding_net_forward(x, params, PATCH, STRIDE)
    out = jax.block_until_ready(out)

    # Correctness check vs a pure-JAX reference of the same bf16-stream /
    # f32-accumulate / bf16-output math.
    patches = generate_patches(x, PATCH, STRIDE)
    nHW = (IMG - PATCH) // STRIDE + 1
    N = B * nHW * nHW
    pf = patches.reshape(N, C * PATCH * PATCH)
    w1, b1, w2, b2 = params
    pf_b = pf.astype(jnp.bfloat16).astype(jnp.float32)
    w1_b = w1.astype(jnp.bfloat16).astype(jnp.float32)
    w2_b = w2.astype(jnp.bfloat16).astype(jnp.float32)
    h_ref = jnp.maximum(pf_b @ w1_b + b1, 0.0)
    h_ref = h_ref.astype(jnp.bfloat16).astype(jnp.float32)
    ref = (h_ref @ w2_b + b2).astype(jnp.bfloat16).astype(jnp.float32)

    assert out.shape == (N, EMB)
    assert jnp.allclose(out, ref, atol=2e-2, rtol=2e-2)

    print("KERNEL_OK")
</pallas_src>

<mosaic_0001>
module attributes {stable_mosaic.version = 11 : i64} {
  func.func @_embed_mlp_kernel(%arg0: i32, %arg1: memref<16x192xbf16, #tpu.memory_space<vmem>>, %arg2: memref<192x128xbf16, #tpu.memory_space<vmem>>, %arg3: memref<1x128xf32, #tpu.memory_space<vmem>>, %arg4: memref<128x128xbf16, #tpu.memory_space<vmem>>, %arg5: memref<1x128xf32, #tpu.memory_space<vmem>>, %arg6: memref<16x128xbf16, #tpu.memory_space<vmem>>) attributes {dimension_semantics = [#tpu.dimension_semantics<parallel>], iteration_bounds = array<i64: 2>, scalar_prefetch = 0 : i64, scratch_operands = 0 : i64, tpu.core_type = #tpu.core_type<tc>, window_params = [{transform_indices = @transform_0, window_bounds = array<i64: 16, 192>}, {pipeline_mode = #tpu.pipeline_mode<synchronous>, transform_indices = @transform_1, window_bounds = array<i64: 192, 128>}, {pipeline_mode = #tpu.pipeline_mode<synchronous>, transform_indices = @transform_2, window_bounds = array<i64: 1, 128>}, {pipeline_mode = #tpu.pipeline_mode<synchronous>, transform_indices = @transform_3, window_bounds = array<i64: 128, 128>}, {pipeline_mode = #tpu.pipeline_mode<synchronous>, transform_indices = @transform_4, window_bounds = array<i64: 1, 128>}, {transform_indices = @transform_5, window_bounds = array<i64: 16, 128>}]} {
    %c0 = arith.constant 0 : index
    %c0_0 = arith.constant 0 : index
    %0 = vector.load %arg1[%c0, %c0_0] : memref<16x192xbf16, #tpu.memory_space<vmem>>, vector<16x192xbf16>
    %c0_1 = arith.constant 0 : index
    %c0_2 = arith.constant 0 : index
    %1 = vector.load %arg2[%c0_1, %c0_2] : memref<192x128xbf16, #tpu.memory_space<vmem>>, vector<192x128xbf16>
    %cst = arith.constant dense<0.000000e+00> : vector<16x128xf32>
    %2 = tpu.matmul %0, %1, %cst {dimension_numbers = #tpu.dot_dimension_numbers<[1], [0], [0], [1], [0, 0, 1, 1], [], []>} : vector<16x192xbf16>, vector<192x128xbf16>, vector<16x128xf32> -> vector<16x128xf32>
    %c0_3 = arith.constant 0 : index
    %c0_4 = arith.constant 0 : index
    %3 = vector.load %arg3[%c0_3, %c0_4] : memref<1x128xf32, #tpu.memory_space<vmem>>, vector<1x128xf32>
    %4 = vector.broadcast %3 : vector<1x128xf32> to vector<16x128xf32>
    %5 = arith.addf %2, %4 : vector<16x128xf32>
    %cst_5 = arith.constant 0.000000e+00 : f32
    %6 = vector.broadcast %cst_5 : f32 to vector<16x128xf32>
    %7 = arith.maximumf %5, %6 : vector<16x128xf32>
    %8 = arith.truncf %7 : vector<16x128xf32> to vector<16x128xbf16>
    %c0_6 = arith.constant 0 : index
    %c0_7 = arith.constant 0 : index
    %9 = vector.load %arg4[%c0_6, %c0_7] : memref<128x128xbf16, #tpu.memory_space<vmem>>, vector<128x128xbf16>
    %cst_8 = arith.constant dense<0.000000e+00> : vector<16x128xf32>
    %10 = tpu.matmul %8, %9, %cst_8 {dimension_numbers = #tpu.dot_dimension_numbers<[1], [0], [0], [1], [0, 0, 1, 1], [], []>} : vector<16x128xbf16>, vector<128x128xbf16>, vector<16x128xf32> -> vector<16x128xf32>
    %c0_9 = arith.constant 0 : index
    %c0_10 = arith.constant 0 : index
    %11 = vector.load %arg5[%c0_9, %c0_10] : memref<1x128xf32, #tpu.memory_space<vmem>>, vector<1x128xf32>
    %12 = vector.broadcast %11 : vector<1x128xf32> to vector<16x128xf32>
    %13 = arith.addf %10, %12 : vector<16x128xf32>
    %14 = arith.truncf %13 : vector<16x128xf32> to vector<16x128xbf16>
    %c0_11 = arith.constant 0 : index
    %c0_12 = arith.constant 0 : index
    %15 = vector.load %arg6[%c0_11, %c0_12] : memref<16x128xbf16, #tpu.memory_space<vmem>>, vector<16x128xbf16>
    tpu.vector_store %arg6[%c0_11, %c0_12], %14 {strides = array<i32>} : memref<16x128xbf16, #tpu.memory_space<vmem>>, vector<16x128xbf16>,
    return
  }
  func.func @transform_0(%arg0: i32) -> (i32, i32) {
    %c0_i32 = arith.constant 0 : i32
    %c0_i32_0 = arith.constant 0 : i32
    return %arg0, %c0_i32 : i32, i32
  }
  func.func @transform_1(%arg0: i32) -> (i32, i32) {
    %c0_i32 = arith.constant 0 : i32
    %c0_i32_0 = arith.constant 0 : i32
    %c0_i32_1 = arith.constant 0 : i32
    return %c0_i32, %c0_i32_0 : i32, i32
  }
  func.func @transform_2(%arg0: i32) -> (i32, i32) {
    %c0_i32 = arith.constant 0 : i32
    %c0_i32_0 = arith.constant 0 : i32
    %c0_i32_1 = arith.constant 0 : i32
    return %c0_i32, %c0_i32_0 : i32, i32
  }
  func.func @transform_3(%arg0: i32) -> (i32, i32) {
    %c0_i32 = arith.constant 0 : i32
    %c0_i32_0 = arith.constant 0 : i32
    %c0_i32_1 = arith.constant 0 : i32
    return %c0_i32, %c0_i32_0 : i32, i32
  }
  func.func @transform_4(%arg0: i32) -> (i32, i32) {
    %c0_i32 = arith.constant 0 : i32
    %c0_i32_0 = arith.constant 0 : i32
    %c0_i32_1 = arith.constant 0 : i32
    return %c0_i32, %c0_i32_0 : i32, i32
  }
  func.func @transform_5(%arg0: i32) -> (i32, i32) {
    %c0_i32 = arith.constant 0 : i32
    %c0_i32_0 = arith.constant 0 : i32
    return %arg0, %c0_i32 : i32, i32
  }
}

</mosaic_0001>

<llo_original>
// kernel: conv_embedding_net_forward.1
$region0: #{conv_embedding_net_forward.1}
  #allocation0 [shape = 'u32[]', space=smem, size = 0x4, offset = 0x4, fixed_abs, tag = 'smem constant byte address 0x4 - core index']
  #allocation1 [shape = 'u32[72,128]{1,0:T(1,128)}', space=vmem, size = 0x9000, scoped, tag = 'internal scratch']
  %s0 = inlined_call_operand.vmem [shape: bf16[32,192], index: 0, kind: input, shape index: {}]
  %s1 = inlined_call_operand.vmem [shape: bf16[192,128], index: 1, kind: input, shape index: {}]
  %s2 = inlined_call_operand.vmem [shape: f32[1,128], index: 2, kind: input, shape index: {}]
  %s3 = inlined_call_operand.vmem [shape: bf16[128,128], index: 3, kind: input, shape index: {}]
  %s4 = inlined_call_operand.vmem [shape: f32[1,128], index: 4, kind: input, shape index: {}]
  %s5 = inlined_call_operand.vmem [shape: bf16[32,128], index: 5, kind: output, shape index: {}]
  %s6 = sld [smem:[#allocation0]]
  $region53: #{conv_embedding_net_forward.1} parent=0
    _
  %s8 = ssub.s32 1, %s6
  %s9 = scalar_select 0, %s8, %s6
  loop: start=0, step=1, limit=4
  $region2: #{conv_embedding_net_forward.1} parent=0 // loop_pre_header
    _
  $region3: #{conv_embedding_net_forward.1} parent=0 // loop_header
    %s11 = sphi 0, %s15
    %p12 = scmp.ge.s32.totalorder %s11, 4
    %s21 = sphi 0, %s23
    %s24 = sphi 0, %s21
    %s25 = sphi 0, %s24
    %s41 = sphi 0, %s25
    %s45 = sphi 0, %s45
    %s47 = sphi 0, %s45
    %s48 = sphi 0, %s47
    %s62 = sphi 0, %s48
    %s66 = sphi 0, %s66
    %s68 = sphi 0, %s66
    %s69 = sphi 0, %s68
    %s83 = sphi 0, %s69
    %s87 = sphi 0, %s87
    %s89 = sphi 0, %s87
    %s90 = sphi 0, %s89
    %s104 = sphi 0, %s90
    %s108 = sphi 0, %s108
    %s110 = sphi 0, %s108
    %s111 = sphi 0, %s110
    %s125 = sphi 0, %s111
    %s131 = sphi 0, %s133
    %s134 = sphi 0, %s131
    %s135 = sphi 0, %s134
    %s151 = sphi 0, %s135
  $region4: #{conv_embedding_net_forward.1} parent=0 // loop_header_branch
    %14 = sbr.rel (%p12) target = $region8
  $region5: #{conv_embedding_net_forward.1} parent=0 // loop_body
    %s16 = ssub.s32 %s11, 1
    %s17 = ssub.s32 %s11, 2
    %s18 = sadd.s32 %s11, 1
    %s19 = ssub.s32 %s11, %s18
    %p20 = scmp.eq.s32.totalorder %s19, 0
    %s22 = sadd.s32 %s21, 1
    %s23 = scalar_select %p20, %s21, %s22
    %p26 = pneg %p20
    %p27 = scmp.eq.s32.totalorder %s11, 1
    %p28 = por %p26, %p27
    %p29 = scmp.ne.s32.totalorder %s21, %s24
    %p30 = scmp.eq.s32.totalorder %s11, 0
    %p31 = por %p29, %p30
    %p32 = scmp.ne.s32.totalorder %s21, %s24
    %p33 = scmp.eq.s32.totalorder %s16, 1
    %p34 = por %p32, %p33
    %p35 = scmp.ne.s32.totalorder %s24, %s25
    %p36 = scmp.eq.s32.totalorder %s16, 0
    %p37 = por %p35, %p36
    %p38 = scmp.ne.s32.totalorder %s24, %s25
    %p39 = scmp.eq.s32.totalorder %s17, 1
    %p40 = por %p38, %p39
    %p42 = scmp.ne.s32.totalorder %s25, %s41
    %p43 = scmp.eq.s32.totalorder %s17, 0
    %p44 = por %p42, %p43
    %s46 = sadd.s32 %s45, 1
    %p49 = scmp.eq.s32.totalorder %s11, 1
    %p50 = scmp.ne.s32.totalorder %s45, %s47
    %p51 = scmp.eq.s32.totalorder %s11, 0
    %p52 = por %p50, %p51
    %p53 = scmp.ne.s32.totalorder %s45, %s47
    %p54 = scmp.eq.s32.totalorder %s16, 1
    %p55 = por %p53, %p54
    %p56 = scmp.ne.s32.totalorder %s47, %s48
    %p57 = scmp.eq.s32.totalorder %s16, 0
    %p58 = por %p56, %p57
    %p59 = scmp.ne.s32.totalorder %s47, %s48
    %p60 = scmp.eq.s32.totalorder %s17, 1
    %p61 = por %p59, %p60
    %p63 = scmp.ne.s32.totalorder %s48, %s62
    %p64 = scmp.eq.s32.totalorder %s17, 0
    %p65 = por %p63, %p64
    %s67 = sadd.s32 %s66, 1
    %p70 = scmp.eq.s32.totalorder %s11, 1
    %p71 = scmp.ne.s32.totalorder %s66, %s68
    %p72 = scmp.eq.s32.totalorder %s11, 0
    %p73 = por %p71, %p72
    %p74 = scmp.ne.s32.totalorder %s66, %s68
    %p75 = scmp.eq.s32.totalorder %s16, 1
    %p76 = por %p74, %p75
    %p77 = scmp.ne.s32.totalorder %s68, %s69
    %p78 = scmp.eq.s32.totalorder %s16, 0
    %p79 = por %p77, %p78
    %p80 = scmp.ne.s32.totalorder %s68, %s69
    %p81 = scmp.eq.s32.totalorder %s17, 1
    %p82 = por %p80, %p81
    %p84 = scmp.ne.s32.totalorder %s69, %s83
    %p85 = scmp.eq.s32.totalorder %s17, 0
    %p86 = por %p84, %p85
    %s88 = sadd.s32 %s87, 1
    %p91 = scmp.eq.s32.totalorder %s11, 1
    %p92 = scmp.ne.s32.totalorder %s87, %s89
    %p93 = scmp.eq.s32.totalorder %s11, 0
    %p94 = por %p92, %p93
    %p95 = scmp.ne.s32.totalorder %s87, %s89
    %p96 = scmp.eq.s32.totalorder %s16, 1
    %p97 = por %p95, %p96
    %p98 = scmp.ne.s32.totalorder %s89, %s90
    %p99 = scmp.eq.s32.totalorder %s16, 0
    %p100 = por %p98, %p99
    %p101 = scmp.ne.s32.totalorder %s89, %s90
    %p102 = scmp.eq.s32.totalorder %s17, 1
    %p103 = por %p101, %p102
    %p105 = scmp.ne.s32.totalorder %s90, %s104
    %p106 = scmp.eq.s32.totalorder %s17, 0
    %p107 = por %p105, %p106
    %s109 = sadd.s32 %s108, 1
    %p112 = scmp.eq.s32.totalorder %s11, 1
    %p113 = scmp.ne.s32.totalorder %s108, %s110
    %p114 = scmp.eq.s32.totalorder %s11, 0
    %p115 = por %p113, %p114
    %p116 = scmp.ne.s32.totalorder %s108, %s110
    %p117 = scmp.eq.s32.totalorder %s16, 1
    %p118 = por %p116, %p117
    %p119 = scmp.ne.s32.totalorder %s110, %s111
    %p120 = scmp.eq.s32.totalorder %s16, 0
    %p121 = por %p119, %p120
    %p122 = scmp.ne.s32.totalorder %s110, %s111
    %p123 = scmp.eq.s32.totalorder %s17, 1
    %p124 = por %p122, %p123
    %p126 = scmp.ne.s32.totalorder %s111, %s125
    %p127 = scmp.eq.s32.totalorder %s17, 0
    %p128 = por %p126, %p127
    %s129 = ssub.s32 %s11, %s18
    %p130 = scmp.eq.s32.totalorder %s129, 0
    %s132 = sadd.s32 %s131, 1
    %s133 = scalar_select %p130, %s131, %s132
    %p136 = pneg %p130
    %p137 = scmp.eq.s32.totalorder %s11, 1
    %p138 = por %p136, %p137
    %p139 = scmp.ne.s32.totalorder %s131, %s134
    %p140 = scmp.eq.s32.totalorder %s11, 0
    %p141 = por %p139, %p140
    %p142 = scmp.ne.s32.totalorder %s131, %s134
    %p143 = scmp.eq.s32.totalorder %s16, 1
    %p144 = por %p142, %p143
    %p145 = scmp.ne.s32.totalorder %s134, %s135
    %p146 = scmp.eq.s32.totalorder %s16, 0
    %p147 = por %p145, %p146
    %p148 = scmp.ne.s32.totalorder %s134, %s135
    %p149 = scmp.eq.s32.totalorder %s17, 1
    %p150 = por %p148, %p149
    %p152 = scmp.ne.s32.totalorder %s135, %s151
    %p153 = scmp.eq.s32.totalorder %s17, 0
    %p154 = por %p152, %p153
    %p155 = scmp.le.s32.totalorder 1, %s11
    %p156 = scmp.lt.s32.totalorder %s11, 3
    %p157 = pnand %p155, %p156
    %p158 = pneg %p157
    // Predicated region
    $region9: #{conv_embedding_net_forward.1} parent=5 // pred_check
      _
    $region10: #{conv_embedding_net_forward.1} parent=5 // pred_check_branch
      %160 = sbr.rel (%p157) target = $region12
    $region11: #{conv_embedding_net_forward.1} parent=5 // pred_region
      %s161 = ssub.s32 %s11, 1
      // Predicated region
      $region13: #{conv_embedding_net_forward.1} parent=11 // pred_check
        %p162 = pneg %p58
      $region14: #{conv_embedding_net_forward.1} parent=11 // pred_check_branch
        %164 = sbr.rel (%p162) target = $region16
      $region15: #{conv_embedding_net_forward.1} parent=11 // pred_region
        _
      $region16: #{conv_embedding_net_forward.1} parent=11 // pred_fallthru
        _
      // Predicated region
      $region17: #{conv_embedding_net_forward.1} parent=11 // pred_check
        %p165 = pneg %p79
      $region18: #{conv_embedding_net_forward.1} parent=11 // pred_check_branch
        %167 = sbr.rel (%p165) target = $region20
      $region19: #{conv_embedding_net_forward.1} parent=11 // pred_region
        _
      $region20: #{conv_embedding_net_forward.1} parent=11 // pred_fallthru
        _
      // Predicated region
      $region21: #{conv_embedding_net_forward.1} parent=11 // pred_check
        %p168 = pneg %p100
      $region22: #{conv_embedding_net_forward.1} parent=11 // pred_check_branch
        %170 = sbr.rel (%p168) target = $region24
      $region23: #{conv_embedding_net_forward.1} parent=11 // pred_region
        _
      $region24: #{conv_embedding_net_forward.1} parent=11 // pred_fallthru
        _
      // Predicated region
      $region25: #{conv_embedding_net_forward.1} parent=11 // pred_check
        %p171 = pneg %p121
      $region26: #{conv_embedding_net_forward.1} parent=11 // pred_check_branch
        %173 = sbr.rel (%p171) target = $region28
      $region27: #{conv_embedding_net_forward.1} parent=11 // pred_region
        _
      $region28: #{conv_embedding_net_forward.1} parent=11 // pred_fallthru
        _
    $region12: #{conv_embedding_net_forward.1} parent=5 // pred_fallthru
      _
    %p174 = scmp.lt.s32.totalorder %s11, 2
    // Predicated region
    $region29: #{conv_embedding_net_forward.1} parent=5 // pred_check
      %p175 = pneg %p174
    $region30: #{conv_embedding_net_forward.1} parent=5 // pred_check_branch
      %177 = sbr.rel (%p175) target = $region32
    $region31: #{conv_embedding_net_forward.1} parent=5 // pred_region
      // Predicated region
      $region33: #{conv_embedding_net_forward.1} parent=31 // pred_check
        %p178 = pneg %p31
      $region34: #{conv_embedding_net_forward.1} parent=31 // pred_check_branch
        %180 = sbr.rel (%p178) target = $region36
      $region35: #{conv_embedding_net_forward.1} parent=31 // pred_region
        %s181 = smul.u32 2, %s11
        %p182 = scmp.lt.s32.totalorder %s181, 3
        %s183 = scalar_select %p182, %s181, 3
        %s184 = smul.addr %s183, 2
        %s185 = smul.addr %s184, 4
        %s186 = scalar_lea.vmem %s0, %s185
        %s187 = smul.u32 2, %s11
      $region36: #{conv_embedding_net_forward.1} parent=31 // pred_fallthru
        _
    $region32: #{conv_embedding_net_forward.1} parent=5 // pred_fallthru
      _
    %p188 = scmp.le.s32.totalorder 1, %s11
    %p189 = scmp.lt.s32.totalorder %s11, 3
    %p190 = pnand %p188, %p189
    %p191 = pneg %p190
    // Predicated region
    $region37: #{conv_embedding_net_forward.1} parent=5 // pred_check
      _
    $region38: #{conv_embedding_net_forward.1} parent=5 // pred_check_branch
      %193 = sbr.rel (%p190) target = $region40
    $region39: #{conv_embedding_net_forward.1} parent=5 // pred_region
      %s194 = ssub.s32 %s11, 1
      %s195 = smul.u32 2, %s16
      %p196 = scmp.lt.s32.totalorder %s195, 3
      %s197 = scalar_select %p196, %s195, 3
      %s198 = smul.addr %s197, 2
      %s199 = smul.addr %s198, 4
      %s200 = scalar_lea.vmem %s0, %s199
      %p201 = pneg %p37
      %p202 = pneg %p34
      %p203 = pneg %p58
      %p204 = pneg %p55
      %p205 = pneg %p79
      %p206 = pneg %p76
      %p207 = pneg %p100
      %p208 = pneg %p97
      %p209 = pneg %p121
      %p210 = pneg %p118
      %p211 = pneg %p147
      %p212 = pneg %p144
      %s213 = smul.u32 2, %s16
      %p214 = scmp.lt.s32.totalorder %s213, 3
      %s215 = scalar_select %p214, %s213, 3
      %s216 = smul.addr %s215, 4
      %s217 = scalar_lea.vmem %s5, %s216
      %s218 = smul.u32 2, %s16
      %p219 = scmp.lt.s32.totalorder %s218, 3
      %s220 = scalar_select %p219, %s218, 3
      %s221 = smul.addr %s220, 2
      %s222 = smul.addr %s221, 4
      %s223 = scalar_lea.vmem %s0, %s222
      %s224 = smul.u32 2, %s16
      %s225 = smul.u32 2, %s16
      %p226 = scmp.lt.s32.totalorder %s225, 3
      %s227 = scalar_select %p226, %s225, 3
      %s228 = smul.addr %s227, 4
      %s229 = scalar_lea.vmem %s5, %s228
      %s230 = smul.u32 2, %s16
      %v232 = vld [vmem:[%s223] sm:$0xff]
      %v233 = vld [vmem:[%s223 + $0x8] sm:$0xff]
      %v234 = vld [vmem:[%s1] sm:$0xf]
      %v235 = vld [vmem:[%s1 + $0x4] sm:$0xf]
      %v236 = vld [vmem:[%s1 + $0x8] sm:$0xf]
      %v237 = vld [vmem:[%s1 + $0xc] sm:$0xf]
      %v238 = vld [vmem:[%s1 + $0x10] sm:$0xf]
      %v239 = vld [vmem:[%s1 + $0x14] sm:$0xf]
      %v240 = vld [vmem:[%s1 + $0x18] sm:$0xf]
      %v241 = vld [vmem:[%s1 + $0x1c] sm:$0xf]
      %v242 = vld [vmem:[%s1 + $0x20] sm:$0xf]
      %v243 = vld [vmem:[%s1 + $0x24] sm:$0xf]
      %v244 = vld [vmem:[%s1 + $0x28] sm:$0xf]
      %v245 = vld [vmem:[%s1 + $0x2c] sm:$0xf]
      %v246 = vld [vmem:[%s1 + $0x30] sm:$0xf]
      %v247 = vld [vmem:[%s1 + $0x34] sm:$0xf]
      %v248 = vld [vmem:[%s1 + $0x38] sm:$0xf]
      %v249 = vld [vmem:[%s1 + $0x3c] sm:$0xf]
      %v250 = vld [vmem:[%s1 + $0x40] sm:$0xf]
      %v251 = vld [vmem:[%s1 + $0x44] sm:$0xf]
      %v252 = vld [vmem:[%s1 + $0x48] sm:$0xf]
      %v253 = vld [vmem:[%s1 + $0x4c] sm:$0xf]
      %v254 = vld [vmem:[%s1 + $0x50] sm:$0xf]
      %v255 = vld [vmem:[%s1 + $0x54] sm:$0xf]
      %v256 = vld [vmem:[%s1 + $0x58] sm:$0xf]
      %v257 = vld [vmem:[%s1 + $0x5c] sm:$0xf]
      %v258 = vld [vmem:[%s2] sm:$0x1]
      %v260 = vperm.slane %v258, 0
      %v264 = vunpack.c.l.b16 %v232
      %v265 = vunpack.c.h.b16 %v232
      %v266 = vunpack.c.l.b16 %v233
      %v267 = vunpack.c.h.b16 %v233
      %v268 = vpack.c.b16 %v266, %v264
      %v269 = vpack.c.b16 %v267, %v265
      %v295 = vunpack.c.l.b16 %v234
      %v296 = vunpack.c.l.b16 %v235
      %v297 = vunpack.c.l.b16 %v236
      %v298 = vunpack.c.l.b16 %v237
      %v299 = vunpack.c.l.b16 %v238
      %v300 = vunpack.c.l.b16 %v239
      %v301 = vunpack.c.l.b16 %v240
      %v302 = vunpack.c.l.b16 %v241
      %v303 = vunpack.c.l.b16 %v242
      %v304 = vunpack.c.l.b16 %v243
      %v305 = vunpack.c.l.b16 %v244
      %v306 = vunpack.c.l.b16 %v245
      %v307 = vunpack.c.l.b16 %v246
      %v308 = vunpack.c.l.b16 %v247
      %v309 = vunpack.c.l.b16 %v248
      %v310 = vunpack.c.l.b16 %v249
      %v311 = vunpack.c.l.b16 %v250
      %v312 = vunpack.c.l.b16 %v251
      %v313 = vunpack.c.l.b16 %v252
      %v314 = vunpack.c.l.b16 %v253
      %v315 = vunpack.c.l.b16 %v254
      %v316 = vunpack.c.l.b16 %v255
      %v317 = vunpack.c.l.b16 %v256
      %v318 = vunpack.c.l.b16 %v257
      %v319 = vpack.c.b16 %v296, %v295
      %v320 = vpack.c.b16 %v298, %v297
      %v321 = vpack.c.b16 %v300, %v299
      %v322 = vpack.c.b16 %v302, %v301
      %v323 = vpack.c.b16 %v304, %v303
      %v324 = vpack.c.b16 %v306, %v305
      %v325 = vpack.c.b16 %v308, %v307
      %v326 = vpack.c.b16 %v310, %v309
      %v327 = vpack.c.b16 %v312, %v311
      %v328 = vpack.c.b16 %v314, %v313
      %v329 = vpack.c.b16 %v316, %v315
      %v330 = vpack.c.b16 %v318, %v317
      %vm343 = vcmask 523264
      %v345 = vsel %vm343, %v269, 0
      %347 = vmatpush.bf16.msra.mxu0 %v326
      %348 = vmatpush.bf16.msra.mxu0 %v325
      %349 = vmatpush.bf16.msra.mxu0 %v324
      %350 = vmatpush.bf16.msra.mxu0 %v323
      %351 = vmatpush.bf16.msra.mxu0 %v322
      %352 = vmatpush.bf16.msra.mxu0 %v321
      %353 = vmatpush.bf16.msra.mxu0 %v320
      %354 = vmatpush.bf16.msra.mxu0 %v319
      %355 = vmatmul.bf16.gmra.mxu0 %v268
      %v356 = vpop.f32.mrf.mxu0
      %v357 = vadd.f32 %v260, %v356
      %v358 = vpop.f32.mrf.mxu0
      %v359 = vadd.f32 %v260, %v358
      %360 = vdwg.mxu0
      %361 = vmatpush.bf16.msra.mxu0 0
      %362 = vmatpush.bf16.msra.mxu0 0
      %363 = vmatpush.bf16.msra.mxu0 0
      %364 = vmatpush.bf16.msra.mxu0 0
      %365 = vmatpush.bf16.msra.mxu0 %v330
      %366 = vmatpush.bf16.msra.mxu0 %v329
      %367 = vmatpush.bf16.msra.mxu0 %v328
      %368 = vmatpush.bf16.msra.mxu0 %v327
      %369 = vmatmul.bf16.gmra.mxu0 %v345
      %v370 = vpop.f32.mrf.mxu0
      %v371 = vadd.f32 %v357, %v370
      %v372 = vpop.f32.mrf.mxu0
      %v373 = vadd.f32 %v359, %v372
      %374 = vdwg.mxu0
      %v375 = vmax.f32 %v371, 0.0
      %v376 = vmax.f32 %v373, 0.0
      %v377 = vpack.c.bf16 %v376, %v375
      %v378 = vld [vmem:[%s3] sm:$0xf]
      %v379 = vld [vmem:[%s3 + $0x4] sm:$0xf]
      %v380 = vld [vmem:[%s3 + $0x8] sm:$0xf]
      %v381 = vld [vmem:[%s3 + $0xc] sm:$0xf]
      %v382 = vld [vmem:[%s3 + $0x10] sm:$0xf]
      %v383 = vld [vmem:[%s3 + $0x14] sm:$0xf]
      %v384 = vld [vmem:[%s3 + $0x18] sm:$0xf]
      %v385 = vld [vmem:[%s3 + $0x1c] sm:$0xf]
      %v386 = vld [vmem:[%s3 + $0x20] sm:$0xf]
      %v387 = vld [vmem:[%s3 + $0x24] sm:$0xf]
      %v388 = vld [vmem:[%s3 + $0x28] sm:$0xf]
      %v389 = vld [vmem:[%s3 + $0x2c] sm:$0xf]
      %v390 = vld [vmem:[%s3 + $0x30] sm:$0xf]
      %v391 = vld [vmem:[%s3 + $0x34] sm:$0xf]
      %v392 = vld [vmem:[%s3 + $0x38] sm:$0xf]
      %v393 = vld [vmem:[%s3 + $0x3c] sm:$0xf]
      %v394 = vld [vmem:[%s4] sm:$0x1]
      %v396 = vperm.slane %v394, 0
      %v414 = vunpack.c.l.b16 %v378
      %v415 = vunpack.c.l.b16 %v379
      %v416 = vunpack.c.l.b16 %v380
      %v417 = vunpack.c.l.b16 %v381
      %v418 = vunpack.c.l.b16 %v382
      %v419 = vunpack.c.l.b16 %v383
      %v420 = vunpack.c.l.b16 %v384
      %v421 = vunpack.c.l.b16 %v385
      %v422 = vunpack.c.l.b16 %v386
      %v423 = vunpack.c.l.b16 %v387
      %v424 = vunpack.c.l.b16 %v388
      %v425 = vunpack.c.l.b16 %v389
      %v426 = vunpack.c.l.b16 %v390
      %v427 = vunpack.c.l.b16 %v391
      %v428 = vunpack.c.l.b16 %v392
      %v429 = vunpack.c.l.b16 %v393
      %v430 = vpack.c.b16 %v415, %v414
      %v431 = vpack.c.b16 %v417, %v416
      %v432 = vpack.c.b16 %v419, %v418
      %v433 = vpack.c.b16 %v421, %v420
      %v434 = vpack.c.b16 %v423, %v422
      %v435 = vpack.c.b16 %v425, %v424
      %v436 = vpack.c.b16 %v427, %v426
      %v437 = vpack.c.b16 %v429, %v428
      %446 = vmatpush.bf16.msra.mxu0 %v437
      %447 = vmatpush.bf16.msra.mxu0 %v436
      %448 = vmatpush.bf16.msra.mxu0 %v435
      %449 = vmatpush.bf16.msra.mxu0 %v434
      %450 = vmatpush.bf16.msra.mxu0 %v433
      %451 = vmatpush.bf16.msra.mxu0 %v432
      %452 = vmatpush.bf16.msra.mxu0 %v431
      %453 = vmatpush.bf16.msra.mxu0 %v430
      %454 = vmatmul.bf16.gmra.mxu0 %v377
      %v455 = vpop.f32.mrf.mxu0
      %v456 = vadd.f32 %v396, %v455
      %v457 = vpop.f32.mrf.mxu0
      %v458 = vadd.f32 %v396, %v457
      %459 = vdwg.mxu0
      %v460 = vpack.c.bf16 %v456, %v456
      %v461 = vpack.c.bf16 %v458, %v458
      %462 = vst [vmem:[%s229] sm:$0xf] %v460
      %463 = vst [vmem:[%s229 + $0x4] sm:$0xf] %v461
      %s464 = smul.u32 2, %s16
      %p465 = scmp.lt.s32.totalorder %s464, 3
      %s466 = scalar_select %p465, %s464, 3
      %s467 = smul.addr %s466, 4
      %s468 = scalar_lea.vmem %s5, %s467
      // Predicated region
      $region41: #{conv_embedding_net_forward.1} parent=39 // pred_check
        %p469 = pneg %p144
      $region42: #{conv_embedding_net_forward.1} parent=39 // pred_check_branch
        %471 = sbr.rel (%p469) target = $region44
      $region43: #{conv_embedding_net_forward.1} parent=39 // pred_region
        %s472 = smul.u32 2, %s16
      $region44: #{conv_embedding_net_forward.1} parent=39 // pred_fallthru
        _
    $region40: #{conv_embedding_net_forward.1} parent=5 // pred_fallthru
      _
    %p473 = scmp.le.s32.totalorder 2, %s11
    // Predicated region
    $region45: #{conv_embedding_net_forward.1} parent=5 // pred_check
      %p474 = pneg %p473
    $region46: #{conv_embedding_net_forward.1} parent=5 // pred_check_branch
      %476 = sbr.rel (%p474) target = $region48
    $region47: #{conv_embedding_net_forward.1} parent=5 // pred_region
      %s477 = ssub.s32 %s11, 2
      // Predicated region
      $region49: #{conv_embedding_net_forward.1} parent=47 // pred_check
        %p478 = pneg %p150
      $region50: #{conv_embedding_net_forward.1} parent=47 // pred_check_branch
        %480 = sbr.rel (%p478) target = $region52
      $region51: #{conv_embedding_net_forward.1} parent=47 // pred_region
        %s481 = smul.u32 2, %s17
        %p482 = scmp.lt.s32.totalorder %s481, 3
        %s483 = scalar_select %p482, %s481, 3
        %s484 = smul.addr %s483, 4
        %s485 = scalar_lea.vmem %s5, %s484
      $region52: #{conv_embedding_net_forward.1} parent=47 // pred_fallthru
        _
    $region48: #{conv_embedding_net_forward.1} parent=5 // pred_fallthru
      _
  $region6: #{conv_embedding_net_forward.1} parent=0 // loop_footer
    %s15 = sadd.s32 1, %s11
  $region7: #{conv_embedding_net_forward.1} parent=0 // loop_footer_branch
    %10 = sbr.rel target = $region3
  $region8: #{conv_embedding_net_forward.1} parent=0 // loop_exit
    _

</llo_original>
